<compile_context>
chip_gen: v7x
topology: tpu7x:2x2x1
jax: 0.10.0
libtpu: 0.0.40
codegen_flags: <defaults>
</compile_context>

<pallas_src>
import functools

import jax
import jax.numpy as jnp
from jax.experimental import pallas as pl
from jax.experimental.pallas import tpu as pltpu

_LN_EPS = 1e-5  # nn.LayerNorm default


def _round_up(a, b):
    return (a + b - 1) // b * b


def ff_dqn2_kernel(
    x_ref,
    w1_ref, b1_ref, g1_ref, be1_ref,
    w2_ref, b2_ref, g2_ref, be2_ref,
    w3_ref, b3_ref, g3_ref, be3_ref,
    w4_ref, b4_ref, g4_ref, be4_ref,
    w5_ref, b5_ref,
    out_ref,
):
    def dense(h, w_ref, b_ref):
        # bf16 operands on the MXU, f32 accumulation; bias add in f32.
        return jnp.dot(h.astype(jnp.bfloat16), w_ref[...],
                       preferred_element_type=jnp.float32) + b_ref[...]

    def ln_relu(h, g_ref, be_ref):
        # Single-pass LayerNorm in f32: sum + sum(h*h) in one sweep,
        # var = E[h^2] - mu^2, multiply by precomputed 1/D (no divides),
        # one rsqrt per row (EUP slot -> effectively free).
        inv_d = 1.0 / h.shape[-1]
        s = jnp.sum(h, axis=-1, keepdims=True)
        ss = jnp.sum(h * h, axis=-1, keepdims=True)
        mu = s * inv_d
        var = jnp.maximum(ss * inv_d - mu * mu, 0.0)
        scale = jax.lax.rsqrt(var + _LN_EPS)
        y = (h - mu) * scale * g_ref[...] + be_ref[...]
        return jnp.maximum(y, 0.0)

    # layer1 -> norm1 -> relu (-> dropout: identity in eval mode)
    h = ln_relu(dense(x_ref[...], w1_ref, b1_ref), g1_ref, be1_ref)
    # layer2 -> norm2 -> relu
    h = ln_relu(dense(h, w2_ref, b2_ref), g2_ref, be2_ref)
    # layer3 -> norm3 -> relu
    h = ln_relu(dense(h, w3_ref, b3_ref), g3_ref, be3_ref)
    # layer4 -> norm4 -> relu
    h = ln_relu(dense(h, w4_ref, b4_ref), g4_ref, be4_ref)
    # layer5 (output head, zero-padded to a lane-dense 128-wide store)
    out_ref[...] = dense(h, w5_ref, b5_ref).astype(out_ref.dtype)


@functools.partial(jax.jit, static_argnames=("tile_b",))
def ff_dqn2_forward(x, params, tile_b=2048):
    """params: flat tuple (w1,b1,g1,be1, ..., w5,b5), all float32 2D arrays.

    Weights are W^T relative to PyTorch, i.e. stored (in_features, out_features).
    """
    (w1, b1, g1, be1,
     w2, b2, g2, be2,
     w3, b3, g3, be3,
     w4, b4, g4, be4,
     w5, b5) = params

    B, n_obs = x.shape
    n_actions = w5.shape[1]

    # --- batch tiling (tile_b multiple of 8; pad B up to a multiple of tile_b)
    tile_b = _round_up(max(int(tile_b), 8), 8)
    b8 = _round_up(B, 8)
    tile_b = min(tile_b, b8)
    b_pad = _round_up(B, tile_b)
    x_p = jnp.pad(x, ((0, b_pad - B), (0, 0))) if b_pad != B else x
    grid = (b_pad // tile_b,)

    # --- lane-dense head: zero-pad W5/b5 out to a 128-lane multiple
    out_pad = _round_up(max(n_actions, 128), 128)
    w5p = jnp.zeros((w5.shape[0], out_pad), w5.dtype).at[:, :n_actions].set(w5)
    b5p = jnp.zeros((1, out_pad), b5.dtype).at[:, :n_actions].set(b5)

    # --- bf16 weights for the MXU; biases / LayerNorm params stay f32
    w1b, w2b, w3b, w4b, w5b = (w.astype(jnp.bfloat16)
                               for w in (w1, w2, w3, w4, w5p))

    args = (x_p,
            w1b, b1, g1, be1,
            w2b, b2, g2, be2,
            w3b, b3, g3, be3,
            w4b, b4, g4, be4,
            w5b, b5p)

    def const_spec(p):
        # Full-size block, same block every grid step -> stays VMEM-resident.
        return pl.BlockSpec(p.shape, lambda i: (0, 0))

    in_specs = [pl.BlockSpec((tile_b, n_obs), lambda i: (i, 0))]
    in_specs += [const_spec(p) for p in args[1:]]
    out_specs = pl.BlockSpec((tile_b, out_pad), lambda i: (i, 0))

    # --- advisory cost estimate (derived from actual weight shapes)
    weights = (w1b, w2b, w3b, w4b, w5b)
    flops = 2 * b_pad * sum(int(w.shape[0]) * int(w.shape[1]) for w in weights)
    bytes_accessed = (int(x_p.size) * 4 + b_pad * out_pad * 4
                      + sum(int(w.size) * 2 for w in weights)
                      + sum(int(p.size) * 4 for p in (b1, g1, be1, b2, g2, be2,
                                                      b3, g3, be3, b4, g4, be4,
                                                      b5p)))
    transcendentals = 4 * b_pad  # one rsqrt per row per LayerNorm

    out = pl.pallas_call(
        ff_dqn2_kernel,
        out_shape=jax.ShapeDtypeStruct((b_pad, out_pad), jnp.float32),
        grid_spec=pltpu.PrefetchScalarGridSpec(
            num_scalar_prefetch=0,
            grid=grid,
            in_specs=in_specs,
            out_specs=out_specs,
        ),
        compiler_params=pltpu.CompilerParams(
            dimension_semantics=("parallel",),   # megacore sharding on v7x
            vmem_limit_bytes=32 * 1024 * 1024,   # safe on v5e/v6e/v7x; usage ~few MiB
        ),
        cost_estimate=pl.CostEstimate(
            flops=flops,
            transcendentals=transcendentals,
            bytes_accessed=bytes_accessed,
        ),
    )(*args)

    return out[:B, :n_actions]


def init_params(key, n_observations, n_actions):
    """Deterministic synthetic parameters matching FF_DQN_2's shapes."""
    dims = [(n_observations, 128), (128, 128), (128, 64), (64, 32), (32, n_actions)]
    ln_dims = [128, 128, 64, 32]
    params = []
    keys = jax.random.split(key, len(dims) * 2)
    for i, (din, dout) in enumerate(dims):
        bound = 1.0 / jnp.sqrt(jnp.float32(din))
        w = jax.random.uniform(keys[2 * i], (din, dout), jnp.float32, -bound, bound)
        b = jax.random.uniform(keys[2 * i + 1], (1, dout), jnp.float32, -bound, bound)
        params.append(w)
        params.append(b)
        if i < 4:
            # LayerNorm: gamma=1, beta=0 (PyTorch default init)
            params.append(jnp.ones((1, ln_dims[i]), jnp.float32))
            params.append(jnp.zeros((1, ln_dims[i]), jnp.float32))
    return tuple(params)


def reference_forward(x, params):
    """Pure-JAX reference (mirrors the kernel's bf16 matmul inputs, f32 LN)."""
    (w1, b1, g1, be1, w2, b2, g2, be2, w3, b3, g3, be3,
     w4, b4, g4, be4, w5, b5) = params

    def dot(a, w):
        return jnp.dot(a.astype(jnp.bfloat16), w.astype(jnp.bfloat16),
                       preferred_element_type=jnp.float32)

    def ln_relu(h, g, b):
        mu = jnp.mean(h, axis=-1, keepdims=True)
        var = jnp.mean((h - mu) ** 2, axis=-1, keepdims=True)
        return jnp.maximum((h - mu) * jax.lax.rsqrt(var + _LN_EPS) * g + b, 0.0)

    h = ln_relu(dot(x, w1) + b1, g1, be1)
    h = ln_relu(dot(h, w2) + b2, g2, be2)
    h = ln_relu(dot(h, w3) + b3, g3, be3)
    h = ln_relu(dot(h, w4) + b4, g4, be4)
    return dot(h, w5) + b5


if __name__ == "__main__":
    key = jax.random.PRNGKey(0)
    k_x, k_p, k_x2 = jax.random.split(key, 3)

    # Small shapes consistent with the module: a CartPole-ish DQN head.
    B = 8
    n_observations = 16
    n_actions = 4

    params = init_params(k_p, n_observations, n_actions)

    # 1) tiny batch (single grid step)
    x = jax.random.normal(k_x, (B, n_observations), jnp.float32)
    out = jax.block_until_ready(ff_dqn2_forward(x, params))
    ref = reference_forward(x, params)
    assert out.shape == (B, n_actions)
    assert jnp.allclose(out, ref, atol=1e-2, rtol=1e-2), "mismatch vs JAX reference"

    # 2) exercise the batch grid + padding path (B=40, tile_b=16 -> 3 tiles)
    B2 = 40
    x2 = jax.random.normal(k_x2, (B2, n_observations), jnp.float32)
    out2 = jax.block_until_ready(ff_dqn2_forward(x2, params, tile_b=16))
    ref2 = reference_forward(x2, params)
    assert out2.shape == (B2, n_actions)
    assert jnp.allclose(out2, ref2, atol=1e-2, rtol=1e-2), "mismatch (tiled) vs JAX reference"

    print("KERNEL_OK")
</pallas_src>

<mosaic_0001>
module attributes {stable_mosaic.version = 11 : i64} {
  func.func @ff_dqn2_kernel(%arg0: i32, %arg1: memref<8x16xf32, #tpu.memory_space<vmem>>, %arg2: memref<16x128xbf16, #tpu.memory_space<vmem>>, %arg3: memref<1x128xf32, #tpu.memory_space<vmem>>, %arg4: memref<1x128xf32, #tpu.memory_space<vmem>>, %arg5: memref<1x128xf32, #tpu.memory_space<vmem>>, %arg6: memref<128x128xbf16, #tpu.memory_space<vmem>>, %arg7: memref<1x128xf32, #tpu.memory_space<vmem>>, %arg8: memref<1x128xf32, #tpu.memory_space<vmem>>, %arg9: memref<1x128xf32, #tpu.memory_space<vmem>>, %arg10: memref<128x64xbf16, #tpu.memory_space<vmem>>, %arg11: memref<1x64xf32, #tpu.memory_space<vmem>>, %arg12: memref<1x64xf32, #tpu.memory_space<vmem>>, %arg13: memref<1x64xf32, #tpu.memory_space<vmem>>, %arg14: memref<64x32xbf16, #tpu.memory_space<vmem>>, %arg15: memref<1x32xf32, #tpu.memory_space<vmem>>, %arg16: memref<1x32xf32, #tpu.memory_space<vmem>>, %arg17: memref<1x32xf32, #tpu.memory_space<vmem>>, %arg18: memref<32x128xbf16, #tpu.memory_space<vmem>>, %arg19: memref<1x128xf32, #tpu.memory_space<vmem>>, %arg20: memref<8x128xf32, #tpu.memory_space<vmem>>) attributes {dimension_semantics = [#tpu.dimension_semantics<parallel>], iteration_bounds = array<i64: 1>, scalar_prefetch = 0 : i64, scratch_operands = 0 : i64, tpu.core_type = #tpu.core_type<tc>, window_params = [{transform_indices = @transform_0, window_bounds = array<i64: 8, 16>}, {pipeline_mode = #tpu.pipeline_mode<synchronous>, transform_indices = @transform_1, window_bounds = array<i64: 16, 128>}, {pipeline_mode = #tpu.pipeline_mode<synchronous>, transform_indices = @transform_2, window_bounds = array<i64: 1, 128>}, {pipeline_mode = #tpu.pipeline_mode<synchronous>, transform_indices = @transform_3, window_bounds = array<i64: 1, 128>}, {pipeline_mode = #tpu.pipeline_mode<synchronous>, transform_indices = @transform_4, window_bounds = array<i64: 1, 128>}, {pipeline_mode = #tpu.pipeline_mode<synchronous>, transform_indices = @transform_5, window_bounds = array<i64: 128, 128>}, {pipeline_mode = #tpu.pipeline_mode<synchronous>, transform_indices = @transform_6, window_bounds = array<i64: 1, 128>}, {pipeline_mode = #tpu.pipeline_mode<synchronous>, transform_indices = @transform_7, window_bounds = array<i64: 1, 128>}, {pipeline_mode = #tpu.pipeline_mode<synchronous>, transform_indices = @transform_8, window_bounds = array<i64: 1, 128>}, {pipeline_mode = #tpu.pipeline_mode<synchronous>, transform_indices = @transform_9, window_bounds = array<i64: 128, 64>}, {pipeline_mode = #tpu.pipeline_mode<synchronous>, transform_indices = @transform_10, window_bounds = array<i64: 1, 64>}, {pipeline_mode = #tpu.pipeline_mode<synchronous>, transform_indices = @transform_11, window_bounds = array<i64: 1, 64>}, {pipeline_mode = #tpu.pipeline_mode<synchronous>, transform_indices = @transform_12, window_bounds = array<i64: 1, 64>}, {pipeline_mode = #tpu.pipeline_mode<synchronous>, transform_indices = @transform_13, window_bounds = array<i64: 64, 32>}, {pipeline_mode = #tpu.pipeline_mode<synchronous>, transform_indices = @transform_14, window_bounds = array<i64: 1, 32>}, {pipeline_mode = #tpu.pipeline_mode<synchronous>, transform_indices = @transform_15, window_bounds = array<i64: 1, 32>}, {pipeline_mode = #tpu.pipeline_mode<synchronous>, transform_indices = @transform_16, window_bounds = array<i64: 1, 32>}, {pipeline_mode = #tpu.pipeline_mode<synchronous>, transform_indices = @transform_17, window_bounds = array<i64: 32, 128>}, {pipeline_mode = #tpu.pipeline_mode<synchronous>, transform_indices = @transform_18, window_bounds = array<i64: 1, 128>}, {transform_indices = @transform_19, window_bounds = array<i64: 8, 128>}]} {
    %c0 = arith.constant 0 : index
    %c0_0 = arith.constant 0 : index
    %0 = vector.load %arg1[%c0, %c0_0] : memref<8x16xf32, #tpu.memory_space<vmem>>, vector<8x16xf32>
    %1 = arith.truncf %0 : vector<8x16xf32> to vector<8x16xbf16>
    %c0_1 = arith.constant 0 : index
    %c0_2 = arith.constant 0 : index
    %2 = vector.load %arg2[%c0_1, %c0_2] : memref<16x128xbf16, #tpu.memory_space<vmem>>, vector<16x128xbf16>
    %cst = arith.constant dense<0.000000e+00> : vector<8x128xf32>
    %3 = tpu.matmul %1, %2, %cst {dimension_numbers = #tpu.dot_dimension_numbers<[1], [0], [0], [1], [0, 0, 1, 1], [], []>} : vector<8x16xbf16>, vector<16x128xbf16>, vector<8x128xf32> -> vector<8x128xf32>
    %c0_3 = arith.constant 0 : index
    %c0_4 = arith.constant 0 : index
    %4 = vector.load %arg3[%c0_3, %c0_4] : memref<1x128xf32, #tpu.memory_space<vmem>>, vector<1x128xf32>
    %5 = vector.broadcast %4 : vector<1x128xf32> to vector<8x128xf32>
    %6 = arith.addf %3, %5 : vector<8x128xf32>
    %cst_5 = arith.constant dense<0.000000e+00> : vector<8xf32>
    %7 = vector.multi_reduction <add>, %6, %cst_5 [1] : vector<8x128xf32> to vector<8xf32>
    %8 = vector.shape_cast %7 : vector<8xf32> to vector<8x1xf32>
    %9 = arith.mulf %6, %6 : vector<8x128xf32>
    %cst_6 = arith.constant dense<0.000000e+00> : vector<8xf32>
    %10 = vector.multi_reduction <add>, %9, %cst_6 [1] : vector<8x128xf32> to vector<8xf32>
    %11 = vector.shape_cast %10 : vector<8xf32> to vector<8x1xf32>
    %cst_7 = arith.constant 7.812500e-03 : f32
    %12 = vector.broadcast %cst_7 : f32 to vector<8x1xf32>
    %13 = arith.mulf %8, %12 : vector<8x1xf32>
    %cst_8 = arith.constant 7.812500e-03 : f32
    %14 = vector.broadcast %cst_8 : f32 to vector<8x1xf32>
    %15 = arith.mulf %11, %14 : vector<8x1xf32>
    %16 = arith.mulf %13, %13 : vector<8x1xf32>
    %17 = arith.subf %15, %16 : vector<8x1xf32>
    %cst_9 = arith.constant 0.000000e+00 : f32
    %18 = vector.broadcast %cst_9 : f32 to vector<8x1xf32>
    %19 = arith.maximumf %17, %18 : vector<8x1xf32>
    %cst_10 = arith.constant 9.99999974E-6 : f32
    %20 = vector.broadcast %cst_10 : f32 to vector<8x1xf32>
    %21 = arith.addf %19, %20 : vector<8x1xf32>
    %22 = math.rsqrt %21 : vector<8x1xf32>
    %23 = vector.broadcast %13 : vector<8x1xf32> to vector<8x128xf32>
    %24 = arith.subf %6, %23 : vector<8x128xf32>
    %25 = vector.broadcast %22 : vector<8x1xf32> to vector<8x128xf32>
    %26 = arith.mulf %24, %25 : vector<8x128xf32>
    %c0_11 = arith.constant 0 : index
    %c0_12 = arith.constant 0 : index
    %27 = vector.load %arg4[%c0_11, %c0_12] : memref<1x128xf32, #tpu.memory_space<vmem>>, vector<1x128xf32>
    %28 = vector.broadcast %27 : vector<1x128xf32> to vector<8x128xf32>
    %29 = arith.mulf %26, %28 : vector<8x128xf32>
    %c0_13 = arith.constant 0 : index
    %c0_14 = arith.constant 0 : index
    %30 = vector.load %arg5[%c0_13, %c0_14] : memref<1x128xf32, #tpu.memory_space<vmem>>, vector<1x128xf32>
    %31 = vector.broadcast %30 : vector<1x128xf32> to vector<8x128xf32>
    %32 = arith.addf %29, %31 : vector<8x128xf32>
    %cst_15 = arith.constant 0.000000e+00 : f32
    %33 = vector.broadcast %cst_15 : f32 to vector<8x128xf32>
    %34 = arith.maximumf %32, %33 : vector<8x128xf32>
    %35 = arith.truncf %34 : vector<8x128xf32> to vector<8x128xbf16>
    %c0_16 = arith.constant 0 : index
    %c0_17 = arith.constant 0 : index
    %36 = vector.load %arg6[%c0_16, %c0_17] : memref<128x128xbf16, #tpu.memory_space<vmem>>, vector<128x128xbf16>
    %cst_18 = arith.constant dense<0.000000e+00> : vector<8x128xf32>
    %37 = tpu.matmul %35, %36, %cst_18 {dimension_numbers = #tpu.dot_dimension_numbers<[1], [0], [0], [1], [0, 0, 1, 1], [], []>} : vector<8x128xbf16>, vector<128x128xbf16>, vector<8x128xf32> -> vector<8x128xf32>
    %c0_19 = arith.constant 0 : index
    %c0_20 = arith.constant 0 : index
    %38 = vector.load %arg7[%c0_19, %c0_20] : memref<1x128xf32, #tpu.memory_space<vmem>>, vector<1x128xf32>
    %39 = vector.broadcast %38 : vector<1x128xf32> to vector<8x128xf32>
    %40 = arith.addf %37, %39 : vector<8x128xf32>
    %cst_21 = arith.constant dense<0.000000e+00> : vector<8xf32>
    %41 = vector.multi_reduction <add>, %40, %cst_21 [1] : vector<8x128xf32> to vector<8xf32>
    %42 = vector.shape_cast %41 : vector<8xf32> to vector<8x1xf32>
    %43 = arith.mulf %40, %40 : vector<8x128xf32>
    %cst_22 = arith.constant dense<0.000000e+00> : vector<8xf32>
    %44 = vector.multi_reduction <add>, %43, %cst_22 [1] : vector<8x128xf32> to vector<8xf32>
    %45 = vector.shape_cast %44 : vector<8xf32> to vector<8x1xf32>
    %cst_23 = arith.constant 7.812500e-03 : f32
    %46 = vector.broadcast %cst_23 : f32 to vector<8x1xf32>
    %47 = arith.mulf %42, %46 : vector<8x1xf32>
    %cst_24 = arith.constant 7.812500e-03 : f32
    %48 = vector.broadcast %cst_24 : f32 to vector<8x1xf32>
    %49 = arith.mulf %45, %48 : vector<8x1xf32>
    %50 = arith.mulf %47, %47 : vector<8x1xf32>
    %51 = arith.subf %49, %50 : vector<8x1xf32>
    %cst_25 = arith.constant 0.000000e+00 : f32
    %52 = vector.broadcast %cst_25 : f32 to vector<8x1xf32>
    %53 = arith.maximumf %51, %52 : vector<8x1xf32>
    %cst_26 = arith.constant 9.99999974E-6 : f32
    %54 = vector.broadcast %cst_26 : f32 to vector<8x1xf32>
    %55 = arith.addf %53, %54 : vector<8x1xf32>
    %56 = math.rsqrt %55 : vector<8x1xf32>
    %57 = vector.broadcast %47 : vector<8x1xf32> to vector<8x128xf32>
    %58 = arith.subf %40, %57 : vector<8x128xf32>
    %59 = vector.broadcast %56 : vector<8x1xf32> to vector<8x128xf32>
    %60 = arith.mulf %58, %59 : vector<8x128xf32>
    %c0_27 = arith.constant 0 : index
    %c0_28 = arith.constant 0 : index
    %61 = vector.load %arg8[%c0_27, %c0_28] : memref<1x128xf32, #tpu.memory_space<vmem>>, vector<1x128xf32>
    %62 = vector.broadcast %61 : vector<1x128xf32> to vector<8x128xf32>
    %63 = arith.mulf %60, %62 : vector<8x128xf32>
    %c0_29 = arith.constant 0 : index
    %c0_30 = arith.constant 0 : index
    %64 = vector.load %arg9[%c0_29, %c0_30] : memref<1x128xf32, #tpu.memory_space<vmem>>, vector<1x128xf32>
    %65 = vector.broadcast %64 : vector<1x128xf32> to vector<8x128xf32>
    %66 = arith.addf %63, %65 : vector<8x128xf32>
    %cst_31 = arith.constant 0.000000e+00 : f32
    %67 = vector.broadcast %cst_31 : f32 to vector<8x128xf32>
    %68 = arith.maximumf %66, %67 : vector<8x128xf32>
    %69 = arith.truncf %68 : vector<8x128xf32> to vector<8x128xbf16>
    %c0_32 = arith.constant 0 : index
    %c0_33 = arith.constant 0 : index
    %70 = vector.load %arg10[%c0_32, %c0_33] : memref<128x64xbf16, #tpu.memory_space<vmem>>, vector<128x64xbf16>
    %cst_34 = arith.constant dense<0.000000e+00> : vector<8x64xf32>
    %71 = tpu.matmul %69, %70, %cst_34 {dimension_numbers = #tpu.dot_dimension_numbers<[1], [0], [0], [1], [0, 0, 1, 1], [], []>} : vector<8x128xbf16>, vector<128x64xbf16>, vector<8x64xf32> -> vector<8x64xf32>
    %c0_35 = arith.constant 0 : index
    %c0_36 = arith.constant 0 : index
    %72 = vector.load %arg11[%c0_35, %c0_36] : memref<1x64xf32, #tpu.memory_space<vmem>>, vector<1x64xf32>
    %73 = vector.broadcast %72 : vector<1x64xf32> to vector<8x64xf32>
    %74 = arith.addf %71, %73 : vector<8x64xf32>
    %cst_37 = arith.constant dense<0.000000e+00> : vector<8xf32>
    %75 = vector.multi_reduction <add>, %74, %cst_37 [1] : vector<8x64xf32> to vector<8xf32>
    %76 = vector.shape_cast %75 : vector<8xf32> to vector<8x1xf32>
    %77 = arith.mulf %74, %74 : vector<8x64xf32>
    %cst_38 = arith.constant dense<0.000000e+00> : vector<8xf32>
    %78 = vector.multi_reduction <add>, %77, %cst_38 [1] : vector<8x64xf32> to vector<8xf32>
    %79 = vector.shape_cast %78 : vector<8xf32> to vector<8x1xf32>
    %cst_39 = arith.constant 1.562500e-02 : f32
    %80 = vector.broadcast %cst_39 : f32 to vector<8x1xf32>
    %81 = arith.mulf %76, %80 : vector<8x1xf32>
    %cst_40 = arith.constant 1.562500e-02 : f32
    %82 = vector.broadcast %cst_40 : f32 to vector<8x1xf32>
    %83 = arith.mulf %79, %82 : vector<8x1xf32>
    %84 = arith.mulf %81, %81 : vector<8x1xf32>
    %85 = arith.subf %83, %84 : vector<8x1xf32>
    %cst_41 = arith.constant 0.000000e+00 : f32
    %86 = vector.broadcast %cst_41 : f32 to vector<8x1xf32>
    %87 = arith.maximumf %85, %86 : vector<8x1xf32>
    %cst_42 = arith.constant 9.99999974E-6 : f32
    %88 = vector.broadcast %cst_42 : f32 to vector<8x1xf32>
    %89 = arith.addf %87, %88 : vector<8x1xf32>
    %90 = math.rsqrt %89 : vector<8x1xf32>
    %91 = vector.broadcast %81 : vector<8x1xf32> to vector<8x64xf32>
    %92 = arith.subf %74, %91 : vector<8x64xf32>
    %93 = vector.broadcast %90 : vector<8x1xf32> to vector<8x64xf32>
    %94 = arith.mulf %92, %93 : vector<8x64xf32>
    %c0_43 = arith.constant 0 : index
    %c0_44 = arith.constant 0 : index
    %95 = vector.load %arg12[%c0_43, %c0_44] : memref<1x64xf32, #tpu.memory_space<vmem>>, vector<1x64xf32>
    %96 = vector.broadcast %95 : vector<1x64xf32> to vector<8x64xf32>
    %97 = arith.mulf %94, %96 : vector<8x64xf32>
    %c0_45 = arith.constant 0 : index
    %c0_46 = arith.constant 0 : index
    %98 = vector.load %arg13[%c0_45, %c0_46] : memref<1x64xf32, #tpu.memory_space<vmem>>, vector<1x64xf32>
    %99 = vector.broadcast %98 : vector<1x64xf32> to vector<8x64xf32>
    %100 = arith.addf %97, %99 : vector<8x64xf32>
    %cst_47 = arith.constant 0.000000e+00 : f32
    %101 = vector.broadcast %cst_47 : f32 to vector<8x64xf32>
    %102 = arith.maximumf %100, %101 : vector<8x64xf32>
    %103 = arith.truncf %102 : vector<8x64xf32> to vector<8x64xbf16>
    %c0_48 = arith.constant 0 : index
    %c0_49 = arith.constant 0 : index
    %104 = vector.load %arg14[%c0_48, %c0_49] : memref<64x32xbf16, #tpu.memory_space<vmem>>, vector<64x32xbf16>
    %cst_50 = arith.constant dense<0.000000e+00> : vector<8x32xf32>
    %105 = tpu.matmul %103, %104, %cst_50 {dimension_numbers = #tpu.dot_dimension_numbers<[1], [0], [0], [1], [0, 0, 1, 1], [], []>} : vector<8x64xbf16>, vector<64x32xbf16>, vector<8x32xf32> -> vector<8x32xf32>
    %c0_51 = arith.constant 0 : index
    %c0_52 = arith.constant 0 : index
    %106 = vector.load %arg15[%c0_51, %c0_52] : memref<1x32xf32, #tpu.memory_space<vmem>>, vector<1x32xf32>
    %107 = vector.broadcast %106 : vector<1x32xf32> to vector<8x32xf32>
    %108 = arith.addf %105, %107 : vector<8x32xf32>
    %cst_53 = arith.constant dense<0.000000e+00> : vector<8xf32>
    %109 = vector.multi_reduction <add>, %108, %cst_53 [1] : vector<8x32xf32> to vector<8xf32>
    %110 = vector.shape_cast %109 : vector<8xf32> to vector<8x1xf32>
    %111 = arith.mulf %108, %108 : vector<8x32xf32>
    %cst_54 = arith.constant dense<0.000000e+00> : vector<8xf32>
    %112 = vector.multi_reduction <add>, %111, %cst_54 [1] : vector<8x32xf32> to vector<8xf32>
    %113 = vector.shape_cast %112 : vector<8xf32> to vector<8x1xf32>
    %cst_55 = arith.constant 3.125000e-02 : f32
    %114 = vector.broadcast %cst_55 : f32 to vector<8x1xf32>
    %115 = arith.mulf %110, %114 : vector<8x1xf32>
    %cst_56 = arith.constant 3.125000e-02 : f32
    %116 = vector.broadcast %cst_56 : f32 to vector<8x1xf32>
    %117 = arith.mulf %113, %116 : vector<8x1xf32>
    %118 = arith.mulf %115, %115 : vector<8x1xf32>
    %119 = arith.subf %117, %118 : vector<8x1xf32>
    %cst_57 = arith.constant 0.000000e+00 : f32
    %120 = vector.broadcast %cst_57 : f32 to vector<8x1xf32>
    %121 = arith.maximumf %119, %120 : vector<8x1xf32>
    %cst_58 = arith.constant 9.99999974E-6 : f32
    %122 = vector.broadcast %cst_58 : f32 to vector<8x1xf32>
    %123 = arith.addf %121, %122 : vector<8x1xf32>
    %124 = math.rsqrt %123 : vector<8x1xf32>
    %125 = vector.broadcast %115 : vector<8x1xf32> to vector<8x32xf32>
    %126 = arith.subf %108, %125 : vector<8x32xf32>
    %127 = vector.broadcast %124 : vector<8x1xf32> to vector<8x32xf32>
    %128 = arith.mulf %126, %127 : vector<8x32xf32>
    %c0_59 = arith.constant 0 : index
    %c0_60 = arith.constant 0 : index
    %129 = vector.load %arg16[%c0_59, %c0_60] : memref<1x32xf32, #tpu.memory_space<vmem>>, vector<1x32xf32>
    %130 = vector.broadcast %129 : vector<1x32xf32> to vector<8x32xf32>
    %131 = arith.mulf %128, %130 : vector<8x32xf32>
    %c0_61 = arith.constant 0 : index
    %c0_62 = arith.constant 0 : index
    %132 = vector.load %arg17[%c0_61, %c0_62] : memref<1x32xf32, #tpu.memory_space<vmem>>, vector<1x32xf32>
    %133 = vector.broadcast %132 : vector<1x32xf32> to vector<8x32xf32>
    %134 = arith.addf %131, %133 : vector<8x32xf32>
    %cst_63 = arith.constant 0.000000e+00 : f32
    %135 = vector.broadcast %cst_63 : f32 to vector<8x32xf32>
    %136 = arith.maximumf %134, %135 : vector<8x32xf32>
    %137 = arith.truncf %136 : vector<8x32xf32> to vector<8x32xbf16>
    %c0_64 = arith.constant 0 : index
    %c0_65 = arith.constant 0 : index
    %138 = vector.load %arg18[%c0_64, %c0_65] : memref<32x128xbf16, #tpu.memory_space<vmem>>, vector<32x128xbf16>
    %cst_66 = arith.constant dense<0.000000e+00> : vector<8x128xf32>
    %139 = tpu.matmul %137, %138, %cst_66 {dimension_numbers = #tpu.dot_dimension_numbers<[1], [0], [0], [1], [0, 0, 1, 1], [], []>} : vector<8x32xbf16>, vector<32x128xbf16>, vector<8x128xf32> -> vector<8x128xf32>
    %c0_67 = arith.constant 0 : index
    %c0_68 = arith.constant 0 : index
    %140 = vector.load %arg19[%c0_67, %c0_68] : memref<1x128xf32, #tpu.memory_space<vmem>>, vector<1x128xf32>
    %141 = vector.broadcast %140 : vector<1x128xf32> to vector<8x128xf32>
    %142 = arith.addf %139, %141 : vector<8x128xf32>
    %c0_69 = arith.constant 0 : index
    %c0_70 = arith.constant 0 : index
    %143 = vector.load %arg20[%c0_69, %c0_70] : memref<8x128xf32, #tpu.memory_space<vmem>>, vector<8x128xf32>
    tpu.vector_store %arg20[%c0_69, %c0_70], %142 {strides = array<i32>} : memref<8x128xf32, #tpu.memory_space<vmem>>, vector<8x128xf32>,
    return
  }
  func.func @transform_0(%arg0: i32) -> (i32, i32) {
    %c0_i32 = arith.constant 0 : i32
    %c0_i32_0 = arith.constant 0 : i32
    return %arg0, %c0_i32 : i32, i32
  }
  func.func @transform_1(%arg0: i32) -> (i32, i32) {
    %c0_i32 = arith.constant 0 : i32
    %c0_i32_0 = arith.constant 0 : i32
    %c0_i32_1 = arith.constant 0 : i32
    return %c0_i32, %c0_i32_0 : i32, i32
  }
  func.func @transform_2(%arg0: i32) -> (i32, i32) {
    %c0_i32 = arith.constant 0 : i32
    %c0_i32_0 = arith.constant 0 : i32
    %c0_i32_1 = arith.constant 0 : i32
    return %c0_i32, %c0_i32_0 : i32, i32
  }
  func.func @transform_3(%arg0: i32) -> (i32, i32) {
    %c0_i32 = arith.constant 0 : i32
    %c0_i32_0 = arith.constant 0 : i32
    %c0_i32_1 = arith.constant 0 : i32
    return %c0_i32, %c0_i32_0 : i32, i32
  }
  func.func @transform_4(%arg0: i32) -> (i32, i32) {
    %c0_i32 = arith.constant 0 : i32
    %c0_i32_0 = arith.constant 0 : i32
    %c0_i32_1 = arith.constant 0 : i32
    return %c0_i32, %c0_i32_0 : i32, i32
  }
  func.func @transform_5(%arg0: i32) -> (i32, i32) {
    %c0_i32 = arith.constant 0 : i32
    %c0_i32_0 = arith.constant 0 : i32
    %c0_i32_1 = arith.constant 0 : i32
    return %c0_i32, %c0_i32_0 : i32, i32
  }
  func.func @transform_6(%arg0: i32) -> (i32, i32) {
    %c0_i32 = arith.constant 0 : i32
    %c0_i32_0 = arith.constant 0 : i32
    %c0_i32_1 = arith.constant 0 : i32
    return %c0_i32, %c0_i32_0 : i32, i32
  }
  func.func @transform_7(%arg0: i32) -> (i32, i32) {
    %c0_i32 = arith.constant 0 : i32
    %c0_i32_0 = arith.constant 0 : i32
    %c0_i32_1 = arith.constant 0 : i32
    return %c0_i32, %c0_i32_0 : i32, i32
  }
  func.func @transform_8(%arg0: i32) -> (i32, i32) {
    %c0_i32 = arith.constant 0 : i32
    %c0_i32_0 = arith.constant 0 : i32
    %c0_i32_1 = arith.constant 0 : i32
    return %c0_i32, %c0_i32_0 : i32, i32
  }
  func.func @transform_9(%arg0: i32) -> (i32, i32) {
    %c0_i32 = arith.constant 0 : i32
    %c0_i32_0 = arith.constant 0 : i32
    %c0_i32_1 = arith.constant 0 : i32
    return %c0_i32, %c0_i32_0 : i32, i32
  }
  func.func @transform_10(%arg0: i32) -> (i32, i32) {
    %c0_i32 = arith.constant 0 : i32
    %c0_i32_0 = arith.constant 0 : i32
    %c0_i32_1 = arith.constant 0 : i32
    return %c0_i32, %c0_i32_0 : i32, i32
  }
  func.func @transform_11(%arg0: i32) -> (i32, i32) {
    %c0_i32 = arith.constant 0 : i32
    %c0_i32_0 = arith.constant 0 : i32
    %c0_i32_1 = arith.constant 0 : i32
    return %c0_i32, %c0_i32_0 : i32, i32
  }
  func.func @transform_12(%arg0: i32) -> (i32, i32) {
    %c0_i32 = arith.constant 0 : i32
    %c0_i32_0 = arith.constant 0 : i32
    %c0_i32_1 = arith.constant 0 : i32
    return %c0_i32, %c0_i32_0 : i32, i32
  }
  func.func @transform_13(%arg0: i32) -> (i32, i32) {
    %c0_i32 = arith.constant 0 : i32
    %c0_i32_0 = arith.constant 0 : i32
    %c0_i32_1 = arith.constant 0 : i32
    return %c0_i32, %c0_i32_0 : i32, i32
  }
  func.func @transform_14(%arg0: i32) -> (i32, i32) {
    %c0_i32 = arith.constant 0 : i32
    %c0_i32_0 = arith.constant 0 : i32
    %c0_i32_1 = arith.constant 0 : i32
    return %c0_i32, %c0_i32_0 : i32, i32
  }
  func.func @transform_15(%arg0: i32) -> (i32, i32) {
    %c0_i32 = arith.constant 0 : i32
    %c0_i32_0 = arith.constant 0 : i32
    %c0_i32_1 = arith.constant 0 : i32
    return %c0_i32, %c0_i32_0 : i32, i32
  }
  func.func @transform_16(%arg0: i32) -> (i32, i32) {
    %c0_i32 = arith.constant 0 : i32
    %c0_i32_0 = arith.constant 0 : i32
    %c0_i32_1 = arith.constant 0 : i32
    return %c0_i32, %c0_i32_0 : i32, i32
  }
  func.func @transform_17(%arg0: i32) -> (i32, i32) {
    %c0_i32 = arith.constant 0 : i32
    %c0_i32_0 = arith.constant 0 : i32
    %c0_i32_1 = arith.constant 0 : i32
    return %c0_i32, %c0_i32_0 : i32, i32
  }
  func.func @transform_18(%arg0: i32) -> (i32, i32) {
    %c0_i32 = arith.constant 0 : i32
    %c0_i32_0 = arith.constant 0 : i32
    %c0_i32_1 = arith.constant 0 : i32
    return %c0_i32, %c0_i32_0 : i32, i32
  }
  func.func @transform_19(%arg0: i32) -> (i32, i32) {
    %c0_i32 = arith.constant 0 : i32
    %c0_i32_0 = arith.constant 0 : i32
    return %arg0, %c0_i32 : i32, i32
  }
}

</mosaic_0001>

<llo_original>
// kernel: ff_dqn2_forward.1
$region0: #{ff_dqn2_forward.1}
  #allocation0 [shape = 'u32[]', space=smem, size = 0x4, offset = 0x4, fixed_abs, tag = 'smem constant byte address 0x4 - core index']
  #allocation1 [shape = 'u32[144,128]{1,0:T(1,128)}', space=vmem, size = 0x12000, scoped, tag = 'internal scratch']
  %s0 = inlined_call_operand.vmem [shape: f32[8,16], index: 0, kind: input, shape index: {}]
  %s1 = inlined_call_operand.vmem [shape: bf16[16,128], index: 1, kind: input, shape index: {}]
  %s2 = inlined_call_operand.vmem [shape: f32[1,128], index: 2, kind: input, shape index: {}]
  %s3 = inlined_call_operand.vmem [shape: f32[1,128], index: 3, kind: input, shape index: {}]
  %s4 = inlined_call_operand.vmem [shape: f32[1,128], index: 4, kind: input, shape index: {}]
  %s5 = inlined_call_operand.vmem [shape: bf16[128,128], index: 5, kind: input, shape index: {}]
  %s6 = inlined_call_operand.vmem [shape: f32[1,128], index: 6, kind: input, shape index: {}]
  %s7 = inlined_call_operand.vmem [shape: f32[1,128], index: 7, kind: input, shape index: {}]
  %s8 = inlined_call_operand.vmem [shape: f32[1,128], index: 8, kind: input, shape index: {}]
  %s9 = inlined_call_operand.vmem [shape: bf16[128,64], index: 9, kind: input, shape index: {}]
  %s10 = inlined_call_operand.vmem [shape: f32[1,64], index: 10, kind: input, shape index: {}]
  %s11 = inlined_call_operand.vmem [shape: f32[1,64], index: 11, kind: input, shape index: {}]
  %s12 = inlined_call_operand.vmem [shape: f32[1,64], index: 12, kind: input, shape index: {}]
  %s13 = inlined_call_operand.vmem [shape: bf16[64,32], index: 13, kind: input, shape index: {}]
  %s14 = inlined_call_operand.vmem [shape: f32[1,32], index: 14, kind: input, shape index: {}]
  %s15 = inlined_call_operand.vmem [shape: f32[1,32], index: 15, kind: input, shape index: {}]
  %s16 = inlined_call_operand.vmem [shape: f32[1,32], index: 16, kind: input, shape index: {}]
  %s17 = inlined_call_operand.vmem [shape: bf16[32,128], index: 17, kind: input, shape index: {}]
  %s18 = inlined_call_operand.vmem [shape: f32[1,128], index: 18, kind: input, shape index: {}]
  %s19 = inlined_call_operand.vmem [shape: f32[8,128], index: 19, kind: output, shape index: {}]
  %s20 = sld [smem:[#allocation0]]
  $region86: #{ff_dqn2_forward.1} parent=0
    _
  %s22 = ssub.s32 1, %s20
  %s23 = scalar_select 0, %s22, %s20
  // Predicated region
  $region2: #{ff_dqn2_forward.1} parent=0 // pred_check
    _
  $region3: #{ff_dqn2_forward.1} parent=0 // pred_check_branch
    %25 = sbr.rel (0) target = $region5
  $region4: #{ff_dqn2_forward.1} parent=0 // pred_region
    _
  $region5: #{ff_dqn2_forward.1} parent=0 // pred_fallthru
    _
  // Predicated region
  $region6: #{ff_dqn2_forward.1} parent=0 // pred_check
    _
  $region7: #{ff_dqn2_forward.1} parent=0 // pred_check_branch
    %27 = sbr.rel (0) target = $region9
  $region8: #{ff_dqn2_forward.1} parent=0 // pred_region
    _
  $region9: #{ff_dqn2_forward.1} parent=0 // pred_fallthru
    _
  // Predicated region
  $region10: #{ff_dqn2_forward.1} parent=0 // pred_check
    _
  $region11: #{ff_dqn2_forward.1} parent=0 // pred_check_branch
    %29 = sbr.rel (0) target = $region13
  $region12: #{ff_dqn2_forward.1} parent=0 // pred_region
    _
  $region13: #{ff_dqn2_forward.1} parent=0 // pred_fallthru
    _
  // Predicated region
  $region14: #{ff_dqn2_forward.1} parent=0 // pred_check
    _
  $region15: #{ff_dqn2_forward.1} parent=0 // pred_check_branch
    %31 = sbr.rel (0) target = $region17
  $region16: #{ff_dqn2_forward.1} parent=0 // pred_region
    _
  $region17: #{ff_dqn2_forward.1} parent=0 // pred_fallthru
    _
  // Predicated region
  $region18: #{ff_dqn2_forward.1} parent=0 // pred_check
    _
  $region19: #{ff_dqn2_forward.1} parent=0 // pred_check_branch
    %33 = sbr.rel (0) target = $region21
  $region20: #{ff_dqn2_forward.1} parent=0 // pred_region
    _
  $region21: #{ff_dqn2_forward.1} parent=0 // pred_fallthru
    _
  // Predicated region
  $region22: #{ff_dqn2_forward.1} parent=0 // pred_check
    _
  $region23: #{ff_dqn2_forward.1} parent=0 // pred_check_branch
    %35 = sbr.rel (0) target = $region25
  $region24: #{ff_dqn2_forward.1} parent=0 // pred_region
    _
  $region25: #{ff_dqn2_forward.1} parent=0 // pred_fallthru
    _
  // Predicated region
  $region26: #{ff_dqn2_forward.1} parent=0 // pred_check
    _
  $region27: #{ff_dqn2_forward.1} parent=0 // pred_check_branch
    %37 = sbr.rel (0) target = $region29
  $region28: #{ff_dqn2_forward.1} parent=0 // pred_region
    _
  $region29: #{ff_dqn2_forward.1} parent=0 // pred_fallthru
    _
  // Predicated region
  $region30: #{ff_dqn2_forward.1} parent=0 // pred_check
    _
  $region31: #{ff_dqn2_forward.1} parent=0 // pred_check_branch
    %39 = sbr.rel (0) target = $region33
  $region32: #{ff_dqn2_forward.1} parent=0 // pred_region
    _
  $region33: #{ff_dqn2_forward.1} parent=0 // pred_fallthru
    _
  // Predicated region
  $region34: #{ff_dqn2_forward.1} parent=0 // pred_check
    _
  $region35: #{ff_dqn2_forward.1} parent=0 // pred_check_branch
    %41 = sbr.rel (0) target = $region37
  $region36: #{ff_dqn2_forward.1} parent=0 // pred_region
    _
  $region37: #{ff_dqn2_forward.1} parent=0 // pred_fallthru
    _
  // Predicated region
  $region38: #{ff_dqn2_forward.1} parent=0 // pred_check
    _
  $region39: #{ff_dqn2_forward.1} parent=0 // pred_check_branch
    %43 = sbr.rel (0) target = $region41
  $region40: #{ff_dqn2_forward.1} parent=0 // pred_region
    _
  $region41: #{ff_dqn2_forward.1} parent=0 // pred_fallthru
    _
  // Predicated region
  $region42: #{ff_dqn2_forward.1} parent=0 // pred_check
    _
  $region43: #{ff_dqn2_forward.1} parent=0 // pred_check_branch
    %45 = sbr.rel (0) target = $region45
  $region44: #{ff_dqn2_forward.1} parent=0 // pred_region
    _
  $region45: #{ff_dqn2_forward.1} parent=0 // pred_fallthru
    _
  // Predicated region
  $region46: #{ff_dqn2_forward.1} parent=0 // pred_check
    _
  $region47: #{ff_dqn2_forward.1} parent=0 // pred_check_branch
    %47 = sbr.rel (0) target = $region49
  $region48: #{ff_dqn2_forward.1} parent=0 // pred_region
    _
  $region49: #{ff_dqn2_forward.1} parent=0 // pred_fallthru
    _
  // Predicated region
  $region50: #{ff_dqn2_forward.1} parent=0 // pred_check
    _
  $region51: #{ff_dqn2_forward.1} parent=0 // pred_check_branch
    %49 = sbr.rel (0) target = $region53
  $region52: #{ff_dqn2_forward.1} parent=0 // pred_region
    _
  $region53: #{ff_dqn2_forward.1} parent=0 // pred_fallthru
    _
  // Predicated region
  $region54: #{ff_dqn2_forward.1} parent=0 // pred_check
    _
  $region55: #{ff_dqn2_forward.1} parent=0 // pred_check_branch
    %51 = sbr.rel (0) target = $region57
  $region56: #{ff_dqn2_forward.1} parent=0 // pred_region
    _
  $region57: #{ff_dqn2_forward.1} parent=0 // pred_fallthru
    _
  // Predicated region
  $region58: #{ff_dqn2_forward.1} parent=0 // pred_check
    _
  $region59: #{ff_dqn2_forward.1} parent=0 // pred_check_branch
    %53 = sbr.rel (0) target = $region61
  $region60: #{ff_dqn2_forward.1} parent=0 // pred_region
    _
  $region61: #{ff_dqn2_forward.1} parent=0 // pred_fallthru
    _
  // Predicated region
  $region62: #{ff_dqn2_forward.1} parent=0 // pred_check
    _
  $region63: #{ff_dqn2_forward.1} parent=0 // pred_check_branch
    %55 = sbr.rel (0) target = $region65
  $region64: #{ff_dqn2_forward.1} parent=0 // pred_region
    _
  $region65: #{ff_dqn2_forward.1} parent=0 // pred_fallthru
    _
  // Predicated region
  $region66: #{ff_dqn2_forward.1} parent=0 // pred_check
    _
  $region67: #{ff_dqn2_forward.1} parent=0 // pred_check_branch
    %57 = sbr.rel (0) target = $region69
  $region68: #{ff_dqn2_forward.1} parent=0 // pred_region
    _
  $region69: #{ff_dqn2_forward.1} parent=0 // pred_fallthru
    _
  // Predicated region
  $region70: #{ff_dqn2_forward.1} parent=0 // pred_check
    _
  $region71: #{ff_dqn2_forward.1} parent=0 // pred_check_branch
    %59 = sbr.rel (0) target = $region73
  $region72: #{ff_dqn2_forward.1} parent=0 // pred_region
    _
  $region73: #{ff_dqn2_forward.1} parent=0 // pred_fallthru
    _
  // Predicated region
  $region74: #{ff_dqn2_forward.1} parent=0 // pred_check
    _
  $region75: #{ff_dqn2_forward.1} parent=0 // pred_check_branch
    %61 = sbr.rel (0) target = $region77
  $region76: #{ff_dqn2_forward.1} parent=0 // pred_region
    _
  $region77: #{ff_dqn2_forward.1} parent=0 // pred_fallthru
    _
  %v63 = vld [vmem:[%s0] sm:$0xff]
  %v64 = vpack.c.bf16 %v63, %v63
  %v65 = vld [vmem:[%s1] sm:$0xf]
  %v66 = vld [vmem:[%s1 + $0x4] sm:$0xf]
  %v67 = vld [vmem:[%s2] sm:$0x1]
  %v69 = vlaneseq
  %v70 = vshrl.u32 %v69, 7
  %v71 = vsub.s32 0, %v70
  %v72 = vrot.slane %v67, %v71
  %v76 = vunpack.c.l.b16 %v65
  %v77 = vunpack.c.l.b16 %v66
  %v78 = vpack.c.b16 %v77, %v76
  %vm80 = vcmask 130048
  %v82 = vsel %vm80, %v64, 0
  %84 = vmatprep.subr.bf16.mxu0 0
  %85 = vmatpush1.bf16.msra.mxu0 %v78
  %86 = vmatprep.subr.bf16.mxu0 0
  %87 = vmatpush1.bf16.msra.mxu0 0
  %88 = vmatprep.subr.bf16.mxu0 0
  %89 = vmatpush1.bf16.msra.mxu0 0
  %90 = vmatprep.subr.bf16.mxu0 0
  %91 = vmatpush1.bf16.msra.mxu0 0
  %92 = vmatprep.subr.bf16.mxu0 0
  %93 = vmatpush1.bf16.msra.mxu0 0
  %94 = vmatprep.subr.bf16.mxu0 0
  %95 = vmatpush1.bf16.msra.mxu0 0
  %96 = vmatprep.subr.bf16.mxu0 0
  %97 = vmatpush1.bf16.msra.mxu0 0
  %98 = vmatprep.subr.bf16.mxu0 0
  %99 = vmatpush1.bf16.msra.mxu0 0
  %100 = vmatprep.subr.bf16.mxu0 0
  %101 = vmatpush1.bf16.msra.mxu0 0
  %102 = vmatprep.subr.bf16.mxu0 0
  %103 = vmatpush1.bf16.msra.mxu0 0
  %104 = vmatprep.subr.bf16.mxu0 0
  %105 = vmatpush1.bf16.msra.mxu0 0
  %106 = vmatprep.subr.bf16.mxu0 0
  %107 = vmatpush1.bf16.msra.mxu0 0
  %108 = vmatprep.subr.bf16.mxu0 0
  %109 = vmatpush1.bf16.msra.mxu0 0
  %110 = vmatprep.subr.bf16.mxu0 0
  %111 = vmatpush1.bf16.msra.mxu0 0
  %112 = vmatprep.subr.bf16.mxu0 0
  %113 = vmatpush1.bf16.msra.mxu0 0
  %114 = vmatprep.subr.bf16.mxu0 0
  %115 = vmatpush1.bf16.msra.mxu0 0
  %116 = vmatprep.mubr.bf16.mxu0 0
  %117 = vmatmul.mubr.bf16.gmra.mrb[0].mxu0 %v82
  %v118 = vpop.f32.mrb[0].mxu0
  %v119 = vadd.f32 %v72, %v118
  %v120 = vpop.f32.mrb[0].mxu0
  %v121 = vpop.f32.mrb[0].mxu0
  %v122 = vpop.f32.mrb[0].mxu0
  %123 = vdwg.mxu0
  %124 = vadd.xlane.f32.xlu0 %v119
  %v125 = vpop.xlane.xlu0 %124
  %v126 = vmul.f32 %v119, %v119
  %127 = vadd.xlane.f32.xlu0 %v126
  %v128 = vpop.xlane.xlu0 %127
  %v129 = vmul.f32 %v125, 0.0078125
  %v130 = vmul.f32 %v128, 0.0078125
  %v131 = vmul.f32 %v129, %v129
  %v132 = vsub.f32 %v130, %v131
  %v133 = vmax.f32 %v132, 0.0
  %v134 = vadd.f32 %v133, 1e-05
  %v135 = vrsqrt.pop %v134
  %v136 = vsub.f32 %v119, %v129
  %v137 = vmul.f32 %v136, %v135
  %v138 = vld [vmem:[%s3] sm:$0x1]
  %v140 = vlaneseq
  %v141 = vshrl.u32 %v140, 7
  %v142 = vsub.s32 0, %v141
  %v143 = vrot.slane %v138, %v142
  %v145 = vmul.f32 %v137, %v143
  %v146 = vld [vmem:[%s4] sm:$0x1]
  %v148 = vlaneseq
  %v149 = vshrl.u32 %v148, 7
  %v150 = vsub.s32 0, %v149
  %v151 = vrot.slane %v146, %v150
  %v153 = vadd.f32 %v145, %v151
  %v154 = vmax.f32 %v153, 0.0
  %v155 = vpack.c.bf16 %v154, %v154
  %v156 = vld [vmem:[%s5] sm:$0xf]
  %v157 = vld [vmem:[%s5 + $0x4] sm:$0xf]
  %v158 = vld [vmem:[%s5 + $0x8] sm:$0xf]
  %v159 = vld [vmem:[%s5 + $0xc] sm:$0xf]
  %v160 = vld [vmem:[%s5 + $0x10] sm:$0xf]
  %v161 = vld [vmem:[%s5 + $0x14] sm:$0xf]
  %v162 = vld [vmem:[%s5 + $0x18] sm:$0xf]
  %v163 = vld [vmem:[%s5 + $0x1c] sm:$0xf]
  %v164 = vld [vmem:[%s5 + $0x20] sm:$0xf]
  %v165 = vld [vmem:[%s5 + $0x24] sm:$0xf]
  %v166 = vld [vmem:[%s5 + $0x28] sm:$0xf]
  %v167 = vld [vmem:[%s5 + $0x2c] sm:$0xf]
  %v168 = vld [vmem:[%s5 + $0x30] sm:$0xf]
  %v169 = vld [vmem:[%s5 + $0x34] sm:$0xf]
  %v170 = vld [vmem:[%s5 + $0x38] sm:$0xf]
  %v171 = vld [vmem:[%s5 + $0x3c] sm:$0xf]
  %v172 = vld [vmem:[%s6] sm:$0x1]
  %v174 = vlaneseq
  %v175 = vshrl.u32 %v174, 7
  %v176 = vsub.s32 0, %v175
  %v177 = vrot.slane %v172, %v176
  %v195 = vunpack.c.l.b16 %v156
  %v196 = vunpack.c.l.b16 %v157
  %v197 = vunpack.c.l.b16 %v158
  %v198 = vunpack.c.l.b16 %v159
  %v199 = vunpack.c.l.b16 %v160
  %v200 = vunpack.c.l.b16 %v161
  %v201 = vunpack.c.l.b16 %v162
  %v202 = vunpack.c.l.b16 %v163
  %v203 = vunpack.c.l.b16 %v164
  %v204 = vunpack.c.l.b16 %v165
  %v205 = vunpack.c.l.b16 %v166
  %v206 = vunpack.c.l.b16 %v167
  %v207 = vunpack.c.l.b16 %v168
  %v208 = vunpack.c.l.b16 %v169
  %v209 = vunpack.c.l.b16 %v170
  %v210 = vunpack.c.l.b16 %v171
  %v211 = vpack.c.b16 %v196, %v195
  %v212 = vpack.c.b16 %v198, %v197
  %v213 = vpack.c.b16 %v200, %v199
  %v214 = vpack.c.b16 %v202, %v201
  %v215 = vpack.c.b16 %v204, %v203
  %v216 = vpack.c.b16 %v206, %v205
  %v217 = vpack.c.b16 %v208, %v207
  %v218 = vpack.c.b16 %v210, %v209
  %227 = vmatprep.subr.bf16.mxu0 0
  %228 = vmatpush1.bf16.msra.mxu0 %v211
  %229 = vmatprep.subr.bf16.mxu0 0
  %230 = vmatpush1.bf16.msra.mxu0 %v212
  %231 = vmatprep.subr.bf16.mxu0 0
  %232 = vmatpush1.bf16.msra.mxu0 %v213
  %233 = vmatprep.subr.bf16.mxu0 0
  %234 = vmatpush1.bf16.msra.mxu0 %v214
  %235 = vmatprep.subr.bf16.mxu0 0
  %236 = vmatpush1.bf16.msra.mxu0 %v215
  %237 = vmatprep.subr.bf16.mxu0 0
  %238 = vmatpush1.bf16.msra.mxu0 %v216
  %239 = vmatprep.subr.bf16.mxu0 0
  %240 = vmatpush1.bf16.msra.mxu0 %v217
  %241 = vmatprep.subr.bf16.mxu0 0
  %242 = vmatpush1.bf16.msra.mxu0 %v218
  %243 = vmatprep.subr.bf16.mxu0 0
  %244 = vmatpush1.bf16.msra.mxu0 0
  %245 = vmatprep.subr.bf16.mxu0 0
  %246 = vmatpush1.bf16.msra.mxu0 0
  %247 = vmatprep.subr.bf16.mxu0 0
  %248 = vmatpush1.bf16.msra.mxu0 0
  %249 = vmatprep.subr.bf16.mxu0 0
  %250 = vmatpush1.bf16.msra.mxu0 0
  %251 = vmatprep.subr.bf16.mxu0 0
  %252 = vmatpush1.bf16.msra.mxu0 0
  %253 = vmatprep.subr.bf16.mxu0 0
  %254 = vmatpush1.bf16.msra.mxu0 0
  %255 = vmatprep.subr.bf16.mxu0 0
  %256 = vmatpush1.bf16.msra.mxu0 0
  %257 = vmatprep.subr.bf16.mxu0 0
  %258 = vmatpush1.bf16.msra.mxu0 0
  %259 = vmatprep.mubr.bf16.mxu0 0
  %260 = vmatmul.mubr.bf16.gmra.mrb[0].mxu0 %v155
  %v261 = vpop.f32.mrb[0].mxu0
  %v262 = vadd.f32 %v177, %v261
  %v263 = vpop.f32.mrb[0].mxu0
  %v264 = vpop.f32.mrb[0].mxu0
  %v265 = vpop.f32.mrb[0].mxu0
  %266 = vdwg.mxu0
  %267 = vadd.xlane.f32.xlu0 %v262
  %v268 = vpop.xlane.xlu0 %267
  %v269 = vmul.f32 %v262, %v262
  %270 = vadd.xlane.f32.xlu0 %v269
  %v271 = vpop.xlane.xlu0 %270
  %v272 = vmul.f32 %v268, 0.0078125
  %v273 = vmul.f32 %v271, 0.0078125
  %v274 = vmul.f32 %v272, %v272
  %v275 = vsub.f32 %v273, %v274
  %v276 = vmax.f32 %v275, 0.0
  %v277 = vadd.f32 %v276, 1e-05
  %v278 = vrsqrt.pop %v277
  %v279 = vsub.f32 %v262, %v272
  %v280 = vmul.f32 %v279, %v278
  %v281 = vld [vmem:[%s7] sm:$0x1]
  %v283 = vlaneseq
  %v284 = vshrl.u32 %v283, 7
  %v285 = vsub.s32 0, %v284
  %v286 = vrot.slane %v281, %v285
  %v288 = vmul.f32 %v280, %v286
  %v289 = vld [vmem:[%s8] sm:$0x1]
  %v291 = vlaneseq
  %v292 = vshrl.u32 %v291, 7
  %v293 = vsub.s32 0, %v292
  %v294 = vrot.slane %v289, %v293
  %v296 = vadd.f32 %v288, %v294
  %v297 = vmax.f32 %v296, 0.0
  %v298 = vpack.c.bf16 %v297, %v297
  %v299 = vld [vmem:[%s9] sm:$0xf]
  %v300 = vld [vmem:[%s9 + $0x4] sm:$0xf]
  %v301 = vld [vmem:[%s9 + $0x8] sm:$0xf]
  %v302 = vld [vmem:[%s9 + $0xc] sm:$0xf]
  %v303 = vld [vmem:[%s9 + $0x10] sm:$0xf]
  %v304 = vld [vmem:[%s9 + $0x14] sm:$0xf]
  %v305 = vld [vmem:[%s9 + $0x18] sm:$0xf]
  %v306 = vld [vmem:[%s9 + $0x1c] sm:$0xf]
  %v307 = vld [vmem:[%s9 + $0x20] sm:$0xf]
  %v308 = vld [vmem:[%s9 + $0x24] sm:$0xf]
  %v309 = vld [vmem:[%s9 + $0x28] sm:$0xf]
  %v310 = vld [vmem:[%s9 + $0x2c] sm:$0xf]
  %v311 = vld [vmem:[%s9 + $0x30] sm:$0xf]
  %v312 = vld [vmem:[%s9 + $0x34] sm:$0xf]
  %v313 = vld [vmem:[%s9 + $0x38] sm:$0xf]
  %v314 = vld [vmem:[%s9 + $0x3c] sm:$0xf]
  %v315 = vld [vmem:[%s10] sm:$0x1]
  %v317 = vlaneseq
  %v318 = vshrl.u32 %v317, 7
  %v319 = vsub.s32 0, %v318
  %v320 = vrot.slane %v315, %v319
  %v338 = vunpack.c.l.b16 %v299
  %v339 = vunpack.c.l.b16 %v300
  %v340 = vunpack.c.l.b16 %v301
  %v341 = vunpack.c.l.b16 %v302
  %v342 = vunpack.c.l.b16 %v303
  %v343 = vunpack.c.l.b16 %v304
  %v344 = vunpack.c.l.b16 %v305
  %v345 = vunpack.c.l.b16 %v306
  %v346 = vunpack.c.l.b16 %v307
  %v347 = vunpack.c.l.b16 %v308
  %v348 = vunpack.c.l.b16 %v309
  %v349 = vunpack.c.l.b16 %v310
  %v350 = vunpack.c.l.b16 %v311
  %v351 = vunpack.c.l.b16 %v312
  %v352 = vunpack.c.l.b16 %v313
  %v353 = vunpack.c.l.b16 %v314
  %v354 = vpack.c.b16 %v339, %v338
  %v355 = vpack.c.b16 %v341, %v340
  %v356 = vpack.c.b16 %v343, %v342
  %v357 = vpack.c.b16 %v345, %v344
  %v358 = vpack.c.b16 %v347, %v346
  %v359 = vpack.c.b16 %v349, %v348
  %v360 = vpack.c.b16 %v351, %v350
  %v361 = vpack.c.b16 %v353, %v352
  %370 = vmatprep.subr.bf16.mxu0 0
  %371 = vmatpush1.bf16.msra.mxu0 %v354
  %372 = vmatprep.subr.bf16.mxu0 0
  %373 = vmatpush1.bf16.msra.mxu0 %v355
  %374 = vmatprep.subr.bf16.mxu0 0
  %375 = vmatpush1.bf16.msra.mxu0 %v356
  %376 = vmatprep.subr.bf16.mxu0 0
  %377 = vmatpush1.bf16.msra.mxu0 %v357
  %378 = vmatprep.subr.bf16.mxu0 0
  %379 = vmatpush1.bf16.msra.mxu0 %v358
  %380 = vmatprep.subr.bf16.mxu0 0
  %381 = vmatpush1.bf16.msra.mxu0 %v359
  %382 = vmatprep.subr.bf16.mxu0 0
  %383 = vmatpush1.bf16.msra.mxu0 %v360
  %384 = vmatprep.subr.bf16.mxu0 0
  %385 = vmatpush1.bf16.msra.mxu0 %v361
  %386 = vmatprep.subr.bf16.mxu0 0
  %387 = vmatpush1.bf16.msra.mxu0 0
  %388 = vmatprep.subr.bf16.mxu0 0
  %389 = vmatpush1.bf16.msra.mxu0 0
  %390 = vmatprep.subr.bf16.mxu0 0
  %391 = vmatpush1.bf16.msra.mxu0 0
  %392 = vmatprep.subr.bf16.mxu0 0
  %393 = vmatpush1.bf16.msra.mxu0 0
  %394 = vmatprep.subr.bf16.mxu0 0
  %395 = vmatpush1.bf16.msra.mxu0 0
  %396 = vmatprep.subr.bf16.mxu0 0
  %397 = vmatpush1.bf16.msra.mxu0 0
  %398 = vmatprep.subr.bf16.mxu0 0
  %399 = vmatpush1.bf16.msra.mxu0 0
  %400 = vmatprep.subr.bf16.mxu0 0
  %401 = vmatpush1.bf16.msra.mxu0 0
  %402 = vmatprep.mubr.bf16.mxu0 0
  %403 = vmatmul.mubr.bf16.gmra.mrb[0].mxu0 %v298
  %v404 = vpop.f32.mrb[0].mxu0
  %v405 = vadd.f32 %v320, %v404
  %v406 = vpop.f32.mrb[0].mxu0
  %v407 = vpop.f32.mrb[0].mxu0
  %v408 = vpop.f32.mrb[0].mxu0
  %409 = vdwg.mxu0
  %vm410 = vcmask 523264
  %v411 = vsel %vm410, %v405, 0.0
  %412 = vadd.xlane.f32.xlu0 %v411
  %v413 = vpop.xlane.xlu0 %412
  %v414 = vmul.f32 %v405, %v405
  %v415 = vsel %vm410, %v414, 0.0
  %416 = vadd.xlane.f32.xlu0 %v415
  %v417 = vpop.xlane.xlu0 %416
  %v418 = vmul.f32 %v413, 0.015625
  %v419 = vmul.f32 %v417, 0.015625
  %v420 = vmul.f32 %v418, %v418
  %v421 = vsub.f32 %v419, %v420
  %v422 = vmax.f32 %v421, 0.0
  %v423 = vadd.f32 %v422, 1e-05
  %v424 = vrsqrt.pop %v423
  %v425 = vsub.f32 %v405, %v418
  %v426 = vmul.f32 %v425, %v424
  %v427 = vld [vmem:[%s11] sm:$0x1]
  %v429 = vlaneseq
  %v430 = vshrl.u32 %v429, 7
  %v431 = vsub.s32 0, %v430
  %v432 = vrot.slane %v427, %v431
  %v434 = vmul.f32 %v426, %v432
  %v435 = vld [vmem:[%s12] sm:$0x1]
  %v437 = vlaneseq
  %v438 = vshrl.u32 %v437, 7
  %v439 = vsub.s32 0, %v438
  %v440 = vrot.slane %v435, %v439
  %v442 = vadd.f32 %v434, %v440
  %v443 = vmax.f32 %v442, 0.0
  %v444 = vpack.c.bf16 %v443, %v443
  %v445 = vld [vmem:[%s13] sm:$0xf]
  %v446 = vld [vmem:[%s13 + $0x4] sm:$0xf]
  %v447 = vld [vmem:[%s13 + $0x8] sm:$0xf]
  %v448 = vld [vmem:[%s13 + $0xc] sm:$0xf]
  %v449 = vld [vmem:[%s13 + $0x10] sm:$0xf]
  %v450 = vld [vmem:[%s13 + $0x14] sm:$0xf]
  %v451 = vld [vmem:[%s13 + $0x18] sm:$0xf]
  %v452 = vld [vmem:[%s13 + $0x1c] sm:$0xf]
  %v453 = vld [vmem:[%s14] sm:$0x1]
  %v455 = vlaneseq
  %v456 = vshrl.u32 %v455, 7
  %v457 = vsub.s32 0, %v456
  %v458 = vrot.slane %v453, %v457
  %v468 = vunpack.c.l.b16 %v445
  %v469 = vunpack.c.l.b16 %v446
  %v470 = vunpack.c.l.b16 %v447
  %v471 = vunpack.c.l.b16 %v448
  %v472 = vunpack.c.l.b16 %v449
  %v473 = vunpack.c.l.b16 %v450
  %v474 = vunpack.c.l.b16 %v451
  %v475 = vunpack.c.l.b16 %v452
  %v476 = vpack.c.b16 %v469, %v468
  %v477 = vpack.c.b16 %v471, %v470
  %v478 = vpack.c.b16 %v473, %v472
  %v479 = vpack.c.b16 %v475, %v474
  %v485 = vsel %vm410, %v444, 0
  %487 = vmatprep.subr.bf16.mxu0 0
  %488 = vmatpush1.bf16.msra.mxu0 %v476
  %489 = vmatprep.subr.bf16.mxu0 0
  %490 = vmatpush1.bf16.msra.mxu0 %v477
  %491 = vmatprep.subr.bf16.mxu0 0
  %492 = vmatpush1.bf16.msra.mxu0 %v478
  %493 = vmatprep.subr.bf16.mxu0 0
  %494 = vmatpush1.bf16.msra.mxu0 %v479
  %495 = vmatprep.subr.bf16.mxu0 0
  %496 = vmatpush1.bf16.msra.mxu0 0
  %497 = vmatprep.subr.bf16.mxu0 0
  %498 = vmatpush1.bf16.msra.mxu0 0
  %499 = vmatprep.subr.bf16.mxu0 0
  %500 = vmatpush1.bf16.msra.mxu0 0
  %501 = vmatprep.subr.bf16.mxu0 0
  %502 = vmatpush1.bf16.msra.mxu0 0
  %503 = vmatprep.subr.bf16.mxu0 0
  %504 = vmatpush1.bf16.msra.mxu0 0
  %505 = vmatprep.subr.bf16.mxu0 0
  %506 = vmatpush1.bf16.msra.mxu0 0
  %507 = vmatprep.subr.bf16.mxu0 0
  %508 = vmatpush1.bf16.msra.mxu0 0
  %509 = vmatprep.subr.bf16.mxu0 0
  %510 = vmatpush1.bf16.msra.mxu0 0
  %511 = vmatprep.subr.bf16.mxu0 0
  %512 = vmatpush1.bf16.msra.mxu0 0
  %513 = vmatprep.subr.bf16.mxu0 0
  %514 = vmatpush1.bf16.msra.mxu0 0
  %515 = vmatprep.subr.bf16.mxu0 0
  %516 = vmatpush1.bf16.msra.mxu0 0
  %517 = vmatprep.subr.bf16.mxu0 0
  %518 = vmatpush1.bf16.msra.mxu0 0
  %519 = vmatprep.mubr.bf16.mxu0 0
  %520 = vmatmul.mubr.bf16.gmra.mrb[0].mxu0 %v485
  %v521 = vpop.f32.mrb[0].mxu0
  %v522 = vadd.f32 %v458, %v521
  %v523 = vpop.f32.mrb[0].mxu0
  %v524 = vpop.f32.mrb[0].mxu0
  %v525 = vpop.f32.mrb[0].mxu0
  %526 = vdwg.mxu0
  %vm527 = vcmask 261120
  %v528 = vsel %vm527, %v522, 0.0
  %529 = vadd.xlane.f32.xlu0 %v528
  %v530 = vpop.xlane.xlu0 %529
  %v531 = vmul.f32 %v522, %v522
  %v532 = vsel %vm527, %v531, 0.0
  %533 = vadd.xlane.f32.xlu0 %v532
  %v534 = vpop.xlane.xlu0 %533
  %v535 = vmul.f32 %v530, 0.03125
  %v536 = vmul.f32 %v534, 0.03125
  %v537 = vmul.f32 %v535, %v535
  %v538 = vsub.f32 %v536, %v537
  %v539 = vmax.f32 %v538, 0.0
  %v540 = vadd.f32 %v539, 1e-05
  %v541 = vrsqrt.pop %v540
  %v542 = vsub.f32 %v522, %v535
  %v543 = vmul.f32 %v542, %v541
  %v544 = vld [vmem:[%s15] sm:$0x1]
  %v546 = vlaneseq
  %v547 = vshrl.u32 %v546, 7
  %v548 = vsub.s32 0, %v547
  %v549 = vrot.slane %v544, %v548
  %v551 = vmul.f32 %v543, %v549
  %v552 = vld [vmem:[%s16] sm:$0x1]
  %v554 = vlaneseq
  %v555 = vshrl.u32 %v554, 7
  %v556 = vsub.s32 0, %v555
  %v557 = vrot.slane %v552, %v556
  %v559 = vadd.f32 %v551, %v557
  %v560 = vmax.f32 %v559, 0.0
  %v561 = vpack.c.bf16 %v560, %v560
  %v562 = vld [vmem:[%s17] sm:$0xf]
  %v563 = vld [vmem:[%s17 + $0x4] sm:$0xf]
  %v564 = vld [vmem:[%s17 + $0x8] sm:$0xf]
  %v565 = vld [vmem:[%s17 + $0xc] sm:$0xf]
  %v566 = vld [vmem:[%s18] sm:$0x1]
  %v568 = vlaneseq
  %v569 = vshrl.u32 %v568, 7
  %v570 = vsub.s32 0, %v569
  %v571 = vrot.slane %v566, %v570
  %v577 = vunpack.c.l.b16 %v562
  %v578 = vunpack.c.l.b16 %v563
  %v579 = vunpack.c.l.b16 %v564
  %v580 = vunpack.c.l.b16 %v565
  %v581 = vpack.c.b16 %v578, %v577
  %v582 = vpack.c.b16 %v580, %v579
  %v586 = vsel %vm527, %v561, 0
  %588 = vmatprep.subr.bf16.mxu0 0
  %589 = vmatpush1.bf16.msra.mxu0 %v581
  %590 = vmatprep.subr.bf16.mxu0 0
  %591 = vmatpush1.bf16.msra.mxu0 %v582
  %592 = vmatprep.subr.bf16.mxu0 0
  %593 = vmatpush1.bf16.msra.mxu0 0
  %594 = vmatprep.subr.bf16.mxu0 0
  %595 = vmatpush1.bf16.msra.mxu0 0
  %596 = vmatprep.subr.bf16.mxu0 0
  %597 = vmatpush1.bf16.msra.mxu0 0
  %598 = vmatprep.subr.bf16.mxu0 0
  %599 = vmatpush1.bf16.msra.mxu0 0
  %600 = vmatprep.subr.bf16.mxu0 0
  %601 = vmatpush1.bf16.msra.mxu0 0
  %602 = vmatprep.subr.bf16.mxu0 0
  %603 = vmatpush1.bf16.msra.mxu0 0
  %604 = vmatprep.subr.bf16.mxu0 0
  %605 = vmatpush1.bf16.msra.mxu0 0
  %606 = vmatprep.subr.bf16.mxu0 0
  %607 = vmatpush1.bf16.msra.mxu0 0
  %608 = vmatprep.subr.bf16.mxu0 0
  %609 = vmatpush1.bf16.msra.mxu0 0
  %610 = vmatprep.subr.bf16.mxu0 0
  %611 = vmatpush1.bf16.msra.mxu0 0
  %612 = vmatprep.subr.bf16.mxu0 0
  %613 = vmatpush1.bf16.msra.mxu0 0
  %614 = vmatprep.subr.bf16.mxu0 0
  %615 = vmatpush1.bf16.msra.mxu0 0
  %616 = vmatprep.subr.bf16.mxu0 0
  %617 = vmatpush1.bf16.msra.mxu0 0
  %618 = vmatprep.subr.bf16.mxu0 0
  %619 = vmatpush1.bf16.msra.mxu0 0
  %620 = vmatprep.mubr.bf16.mxu0 0
  %621 = vmatmul.mubr.bf16.gmra.mrb[0].mxu0 %v586
  %v622 = vpop.f32.mrb[0].mxu0
  %v623 = vadd.f32 %v571, %v622
  %v624 = vpop.f32.mrb[0].mxu0
  %v625 = vpop.f32.mrb[0].mxu0
  %v626 = vpop.f32.mrb[0].mxu0
  %627 = vdwg.mxu0
  %628 = vst [vmem:[%s19] sm:$0xff] %v623
  // Predicated region
  $region78: #{ff_dqn2_forward.1} parent=0 // pred_check
    _
  $region79: #{ff_dqn2_forward.1} parent=0 // pred_check_branch
    %630 = sbr.rel (0) target = $region81
  $region80: #{ff_dqn2_forward.1} parent=0 // pred_region
    _
  $region81: #{ff_dqn2_forward.1} parent=0 // pred_fallthru
    _
  // Predicated region
  $region82: #{ff_dqn2_forward.1} parent=0 // pred_check
    _
  $region83: #{ff_dqn2_forward.1} parent=0 // pred_check_branch
    %632 = sbr.rel (0) target = $region85
  $region84: #{ff_dqn2_forward.1} parent=0 // pred_region
    _
  $region85: #{ff_dqn2_forward.1} parent=0 // pred_fallthru
    _

</llo_original>
